<compile_context>
chip_gen: v5e
topology: v5e:2x2
jax: 0.10.0
libtpu: 0.0.40
codegen_flags: <defaults>
</compile_context>

<pallas_src>
import functools

import jax
import jax.numpy as jnp
from jax.experimental import pallas as pl
from jax.experimental.pallas import tpu as pltpu


def _round_up(x, m):
    return ((x + m - 1) // m) * m


def _cdiv(a, b):
    return (a + b - 1) // b


def _fast_recip(x):
    # approx reciprocal on the EUP + one Newton step on the VPU (~f32-exact).
    r = pl.reciprocal(x, approx=True)
    return r * (2.0 - x * r)


def _box_losses_block(b, n_valid):
    """b: (8, N_pad) f32, rows = (s_cx,s_cy,s_w,s_h,t_cx,t_cy,t_w,t_h).
    Returns (l1_sum, giou_sum) over the first n_valid lanes."""
    n_pad = b.shape[1]
    valid = jax.lax.broadcasted_iota(jnp.int32, (1, n_pad), 1) < n_valid

    l1 = jnp.sum(jnp.where(valid, jnp.abs(b[0:4, :] - b[4:8, :]), 0.0))

    scx, scy, sw, sh = b[0:1, :], b[1:2, :], b[2:3, :], b[3:4, :]
    tcx, tcy, tw, th = b[4:5, :], b[5:6, :], b[6:7, :], b[7:8, :]

    sx1, sy1 = scx - 0.5 * sw, scy - 0.5 * sh
    sx2, sy2 = scx + 0.5 * sw, scy + 0.5 * sh
    tx1, ty1 = tcx - 0.5 * tw, tcy - 0.5 * th
    tx2, ty2 = tcx + 0.5 * tw, tcy + 0.5 * th

    area_s = (sx2 - sx1) * (sy2 - sy1)
    area_t = (tx2 - tx1) * (ty2 - ty1)
    iw = jnp.maximum(jnp.minimum(sx2, tx2) - jnp.maximum(sx1, tx1), 0.0)
    ih = jnp.maximum(jnp.minimum(sy2, ty2) - jnp.maximum(sy1, ty1), 0.0)
    inter = iw * ih
    union = area_s + area_t - inter
    ew = jnp.maximum(jnp.maximum(sx2, tx2) - jnp.minimum(sx1, tx1), 0.0)
    eh = jnp.maximum(jnp.maximum(sy2, ty2) - jnp.minimum(sy1, ty1), 0.0)
    enc = ew * eh

    # TODO(synk): no epsilon on union/enc for valid lanes (mirrors torchvision
    # box_ops math); padded / invalid lanes are forced to 1.0 so they never
    # divide by zero.
    inv_union = _fast_recip(jnp.where(valid, union, 1.0))
    inv_enc = _fast_recip(jnp.where(valid, enc, 1.0))
    giou = inter * inv_union - (enc - union) * inv_enc
    giou_sum = jnp.sum(jnp.where(valid, 1.0 - giou, 0.0))
    return l1, giou_sum


# ---------------------------------------------------------------------------
# Fused kernel: weighted CE (== F.cross_entropy(logits.transpose(1,2),
# target_classes, empty_weight)) + L1 + GIoU, all decoder levels, one launch.
# ---------------------------------------------------------------------------
def _set_criterion_kernel(nvalid_ref, logits_ref, tc_ref, box_ref, out_ref, *,
                          eos_coef, n_rows, tile_rows):
    # nvalid_ref : (1,) int32 in SMEM  -- number of matched boxes (runtime)
    # logits_ref : (TR, K)             -- upcast to f32 in-kernel
    # tc_ref     : (TR, 1) int32       -- target class per row (0 = no-object)
    # box_ref    : (8, N_pad) f32      -- level-resident packed src/tgt boxes
    # out_ref    : (8, 128) f32        -- accumulator: row0=CE num, row1=CE den,
    #                                     row2=L1 sum, row3=sum(1-giou)
    r = pl.program_id(1)

    @pl.when(r == 0)
    def _init_and_boxes():
        l1, giou_sum = _box_losses_block(box_ref[...].astype(jnp.float32),
                                         nvalid_ref[0])
        row0 = jax.lax.broadcasted_iota(jnp.int32, (8, 128), 0)
        out_ref[...] = jnp.where(row0 == 2, l1,
                                 jnp.where(row0 == 3, giou_sum, 0.0))

    lg = logits_ref[...].astype(jnp.float32)
    tc = tc_ref[...]
    TR, K = lg.shape

    # Mask the (possibly out-of-bounds) row tail of the last tile in-kernel
    # instead of padding the logits in HBM.
    g_row = r * tile_rows + jax.lax.broadcasted_iota(jnp.int32, (TR, 1), 0)
    row_valid = g_row < n_rows
    lg = jnp.where(row_valid, lg, 0.0)

    cls = jax.lax.broadcasted_iota(jnp.int32, (TR, K), 1)
    sel = cls == tc                                    # in-kernel one-hot mask

    m = jnp.max(lg, axis=-1, keepdims=True)
    lse = jnp.log(jnp.sum(jnp.exp(lg - m), axis=-1, keepdims=True)) + m
    picked = jnp.sum(jnp.where(sel, lg, 0.0), axis=-1, keepdims=True)
    nll = lse - picked                                 # -log softmax[target]

    # empty_weight: eos_coef for no-object class 0 (per the provided module),
    # 1.0 otherwise, 0 for out-of-range tail rows.
    w = jnp.where(row_valid, jnp.where(tc == 0, eos_coef, 1.0), 0.0)

    p_num = jnp.sum(w * nll)
    p_den = jnp.sum(w)
    row0 = jax.lax.broadcasted_iota(jnp.int32, (8, 128), 0)
    out_ref[...] += jnp.where(row0 == 0, p_num, jnp.where(row0 == 1, p_den, 0.0))


def fused_set_criterion_losses(logits, target_classes, boxes_packed,
                               n_matched, eos_coef, max_boxes):
    """logits: (L,B,Q,K); target_classes: (L,B,Q) int; boxes_packed: (L,8,N).
    Returns (loss_ce, loss_bbox, loss_giou), each (L,) f32."""
    L, B, Q, K = logits.shape
    R = B * Q
    lg = logits.reshape(L, R, K)                       # metadata-only reshape
    tc = target_classes.reshape(L, R, 1).astype(jnp.int32)

    # Row tile: multiple of 16 (bf16-native sublane pack), capped at 2048 rows,
    # chosen so n_tiles * TR barely exceeds R (no pad-only grid steps).
    cap = 2048
    r16 = _round_up(R, 16)
    n_tiles = max(1, _cdiv(r16, cap))
    TR = _round_up(_cdiv(r16, n_tiles), 16)
    n_tiles = _cdiv(R, TR)

    # Box lane axis padded to a STATIC maximum (independent of the matched-box
    # count) so the kernel compiles once per (L, B, Q, K) configuration.
    N = boxes_packed.shape[-1]
    N_pad = max(_round_up(max(max_boxes, N, 1), 128), 128)
    boxes_packed = jnp.pad(boxes_packed.astype(jnp.float32),
                           ((0, 0), (0, 0), (0, N_pad - N)))

    scalars = jnp.asarray([n_matched], jnp.int32)      # runtime SMEM scalar

    kernel = functools.partial(_set_criterion_kernel, eos_coef=float(eos_coef),
                               n_rows=R, tile_rows=TR)
    out = pl.pallas_call(
        kernel,
        out_shape=jax.ShapeDtypeStruct((L, 8, 128), jnp.float32),
        grid_spec=pltpu.PrefetchScalarGridSpec(
            num_scalar_prefetch=1,
            grid=(L, n_tiles),
            in_specs=[
                pl.BlockSpec((None, TR, K), lambda l, r, s: (l, r, 0)),
                pl.BlockSpec((None, TR, 1), lambda l, r, s: (l, r, 0)),
                pl.BlockSpec((None, 8, N_pad), lambda l, r, s: (l, 0, 0)),
            ],
            out_specs=pl.BlockSpec((None, 8, 128), lambda l, r, s: (l, 0, 0)),
        ),
        compiler_params=pltpu.CompilerParams(
            dimension_semantics=("parallel", "arbitrary"),
            vmem_limit_bytes=32 * 1024 * 1024),
    )(scalars, lg, tc, boxes_packed)

    num_boxes = jnp.maximum(scalars[0].astype(jnp.float32), 1.0)
    loss_ce = out[:, 0, 0] / out[:, 1, 0]
    loss_bbox = out[:, 2, 0] / num_boxes
    loss_giou = out[:, 3, 0] / num_boxes
    return loss_ce, loss_bbox, loss_giou


# ---------------------------------------------------------------------------
# SetCriterion (JAX / Pallas port)
# ---------------------------------------------------------------------------
class SetCriterion:
    def __init__(self, num_classes, weight_dict, eos_coef, losses):
        self.num_classes = num_classes
        self.weight_dict = weight_dict
        self.eos_coef = eos_coef
        self.losses = losses
        # NOTE: the provided module uses class index 0 as "no object"
        # (empty_weight[0] = eos_coef, unmatched queries target 0).
        ew = jnp.ones((num_classes + 1,), jnp.float32)
        self.empty_weight = ew.at[0].set(eos_coef)     # for the pure-JAX reference

    def matcher(self, outputs, targets):
        # TODO(synk): Hungarian matching (scipy linear_sum_assignment) is a
        # sequential, data-dependent algorithm with no clean Pallas equivalent;
        # deterministic identity matching is used instead.
        return [(jnp.arange(t['labels'].shape[0]),
                 jnp.arange(t['labels'].shape[0])) for t in targets]

    @staticmethod
    def _src_permutation(indices):
        batch_idx = jnp.concatenate(
            [jnp.full(si.shape, b, jnp.int32) for b, (si, _) in enumerate(indices)])
        src_idx = jnp.concatenate([si.astype(jnp.int32) for si, _ in indices])
        return batch_idx, src_idx

    def _target_classes(self, B, Q, targets, indices):
        batch_idx, src_idx = self._src_permutation(indices)
        labels_o = jnp.concatenate(
            [targets[b]['labels'][ti].astype(jnp.int32)
             for b, (_, ti) in enumerate(indices)])
        # single vectorized scatter (no per-batch .at[].set loop)
        return jnp.zeros((B, Q), jnp.int32).at[batch_idx, src_idx].set(labels_o)

    def _packed_boxes(self, pred_boxes, targets, indices):
        batch_idx, src_idx = self._src_permutation(indices)
        src = pred_boxes[batch_idx, src_idx]                    # (N, 4) single gather
        tgt = jnp.concatenate([targets[b]['boxes'][ti]
                               for b, (_, ti) in enumerate(indices)], axis=0)
        # rows = (s_cx, s_cy, s_w, s_h, t_cx, t_cy, t_w, t_h) -> (8, N)
        return jnp.concatenate([src.T, tgt.T], axis=0).astype(jnp.float32)

    def forward(self, outputs, targets):
        outputs_no_aux = {k: v for k, v in outputs.items()
                          if k not in ('aux_outputs', 'stacked_pred_logits',
                                       'stacked_pred_boxes')}
        levels = [outputs_no_aux] + list(outputs.get('aux_outputs', []))
        L = len(levels)

        # Zero-copy path: DETR decoders already produce a stacked (L,B,Q,*)
        # tensor; use it directly when provided instead of re-stacking in HBM.
        if 'stacked_pred_logits' in outputs:
            logits = outputs['stacked_pred_logits']
            pred_boxes = outputs['stacked_pred_boxes']
        else:
            logits = jnp.stack([lvl['pred_logits'] for lvl in levels])
            pred_boxes = jnp.stack([lvl['pred_boxes'] for lvl in levels])

        B, Q = logits.shape[1], logits.shape[2]
        # TODO(synk): single host — no torch.distributed all_reduce of num_boxes.
        n_matched = sum(int(t['labels'].shape[0]) for t in targets)

        tc_list, box_list = [], []
        for i, lvl in enumerate(levels):
            indices = self.matcher(lvl, targets)
            tc_list.append(self._target_classes(B, Q, targets, indices))
            box_list.append(self._packed_boxes(pred_boxes[i], targets, indices))

        loss_ce, loss_bbox, loss_giou = fused_set_criterion_losses(
            logits, jnp.stack(tc_list), jnp.stack(box_list),
            n_matched, self.eos_coef, B * Q)

        losses = {}
        for i in range(L):
            suffix = '' if i == 0 else f'_{i - 1}'
            if 'labels' in self.losses:
                losses['loss_ce' + suffix] = loss_ce[i]
            if 'boxes' in self.losses:
                losses['loss_bbox' + suffix] = loss_bbox[i]
                losses['loss_giou' + suffix] = loss_giou[i]
        return losses


# ---------------------------------------------------------------------------
# Pure-JAX reference for verification (single level)
# ---------------------------------------------------------------------------
def _ref_losses(outputs, targets, indices, num_boxes, empty_weight):
    logits = outputs['pred_logits']
    B, Q, K = logits.shape
    tc = jnp.zeros((B, Q), jnp.int32)
    for b, (si, ti) in enumerate(indices):
        tc = tc.at[b, si].set(targets[b]['labels'][ti].astype(jnp.int32))
    logp = jax.nn.log_softmax(logits.astype(jnp.float32), axis=-1)
    nll = -jnp.take_along_axis(logp, tc[..., None], axis=-1)[..., 0]
    w = empty_weight[tc]
    loss_ce = jnp.sum(w * nll) / jnp.sum(w)

    src = jnp.concatenate([outputs['pred_boxes'][b][si]
                           for b, (si, _) in enumerate(indices)], 0)
    tgt = jnp.concatenate([targets[b]['boxes'][ti]
                           for b, (_, ti) in enumerate(indices)], 0)
    loss_bbox = jnp.sum(jnp.abs(src - tgt)) / num_boxes

    def xyxy(bx):
        return jnp.stack([bx[:, 0] - 0.5 * bx[:, 2], bx[:, 1] - 0.5 * bx[:, 3],
                          bx[:, 0] + 0.5 * bx[:, 2], bx[:, 1] + 0.5 * bx[:, 3]], -1)
    s, t = xyxy(src), xyxy(tgt)
    area_s = (s[:, 2] - s[:, 0]) * (s[:, 3] - s[:, 1])
    area_t = (t[:, 2] - t[:, 0]) * (t[:, 3] - t[:, 1])
    iw = jnp.clip(jnp.minimum(s[:, 2], t[:, 2]) - jnp.maximum(s[:, 0], t[:, 0]), 0)
    ih = jnp.clip(jnp.minimum(s[:, 3], t[:, 3]) - jnp.maximum(s[:, 1], t[:, 1]), 0)
    inter = iw * ih
    union = area_s + area_t - inter
    iou = inter / union
    ew_ = jnp.clip(jnp.maximum(s[:, 2], t[:, 2]) - jnp.minimum(s[:, 0], t[:, 0]), 0)
    eh_ = jnp.clip(jnp.maximum(s[:, 3], t[:, 3]) - jnp.minimum(s[:, 1], t[:, 1]), 0)
    enc = ew_ * eh_
    giou = iou - (enc - union) / enc
    loss_giou = jnp.sum(1.0 - giou) / num_boxes
    return {'loss_ce': loss_ce, 'loss_bbox': loss_bbox, 'loss_giou': loss_giou}


if __name__ == "__main__":
    key = jax.random.PRNGKey(0)
    B, Q, num_classes = 2, 8, 7          # K = num_classes + 1 = 8
    K = num_classes + 1
    n_boxes_per_image = [3, 2]           # 5 matched boxes total
    L = 3                                # main + 2 aux decoder levels

    k_log, k_c, k_wh, k_t = jax.random.split(key, 4)
    stacked_logits = jax.random.normal(k_log, (L, B, Q, K), jnp.float32)
    stacked_boxes = jnp.concatenate(
        [jax.random.uniform(k_c, (L, B, Q, 2), minval=0.25, maxval=0.75),
         jax.random.uniform(k_wh, (L, B, Q, 2), minval=0.10, maxval=0.40)], axis=-1)

    outputs = {
        'pred_logits': stacked_logits[0],
        'pred_boxes': stacked_boxes[0],
        'aux_outputs': [{'pred_logits': stacked_logits[i],
                         'pred_boxes': stacked_boxes[i]} for i in range(1, L)],
        # zero-copy stacked views (what a DETR decoder already produces)
        'stacked_pred_logits': stacked_logits,
        'stacked_pred_boxes': stacked_boxes,
    }

    targets = []
    for b, n in enumerate(n_boxes_per_image):
        kb1, kb2, kb3 = jax.random.split(jax.random.fold_in(k_t, b), 3)
        labels = jax.random.randint(kb1, (n,), 1, num_classes + 1)
        boxes = jnp.concatenate(
            [jax.random.uniform(kb2, (n, 2), minval=0.25, maxval=0.75),
             jax.random.uniform(kb3, (n, 2), minval=0.10, maxval=0.40)], axis=-1)
        targets.append({'labels': labels, 'boxes': boxes})

    weight_dict = {'loss_ce': 1.0, 'loss_bbox': 5.0, 'loss_giou': 2.0}
    criterion = SetCriterion(num_classes, weight_dict, eos_coef=0.1,
                             losses=['labels', 'boxes'])

    losses = criterion.forward(outputs, targets)
    losses = {k: jax.block_until_ready(v) for k, v in losses.items()}

    # sanity check against pure-JAX reference, per decoder level
    num_boxes = float(max(sum(n_boxes_per_image), 1))
    for i in range(L):
        suffix = '' if i == 0 else f'_{i - 1}'
        lvl = {'pred_logits': stacked_logits[i], 'pred_boxes': stacked_boxes[i]}
        indices = criterion.matcher(lvl, targets)
        ref = _ref_losses(lvl, targets, indices, num_boxes, criterion.empty_weight)
        assert jnp.allclose(losses['loss_ce' + suffix], ref['loss_ce'],
                            rtol=1e-4, atol=1e-5), ('loss_ce' + suffix,
                                                    losses['loss_ce' + suffix],
                                                    ref['loss_ce'])
        assert jnp.allclose(losses['loss_bbox' + suffix], ref['loss_bbox'],
                            rtol=1e-3, atol=1e-5), ('loss_bbox' + suffix,
                                                    losses['loss_bbox' + suffix],
                                                    ref['loss_bbox'])
        assert jnp.allclose(losses['loss_giou' + suffix], ref['loss_giou'],
                            rtol=1e-3, atol=1e-4), ('loss_giou' + suffix,
                                                    losses['loss_giou' + suffix],
                                                    ref['loss_giou'])

    print("KERNEL_OK")
</pallas_src>

<mosaic_0001>
module attributes {stable_mosaic.version = 11 : i64} {
  func.func @_set_criterion_kernel(%arg0: i32, %arg1: i32, %arg2: memref<1xi32, #tpu.memory_space<smem>>, %arg3: memref<1x16x8xf32, #tpu.memory_space<vmem>>, %arg4: memref<1x16x1xi32, #tpu.memory_space<vmem>>, %arg5: memref<1x8x128xf32, #tpu.memory_space<vmem>>, %arg6: memref<1x8x128xf32, #tpu.memory_space<vmem>>) attributes {dimension_semantics = [#tpu.dimension_semantics<parallel>, #tpu.dimension_semantics<arbitrary>], iteration_bounds = array<i64: 3, 1>, scalar_prefetch = 1 : i64, scratch_operands = 0 : i64, tpu.core_type = #tpu.core_type<tc>, window_params = [{transform_indices = @transform_0, window_bounds = array<i64: 1, 16, 8>}, {transform_indices = @transform_1, window_bounds = array<i64: 1, 16, 1>}, {transform_indices = @transform_2, window_bounds = array<i64: 1, 8, 128>}, {transform_indices = @transform_3, window_bounds = array<i64: 1, 8, 128>}]} {
    %c0_i32 = arith.constant 0 : i32
    %0 = arith.cmpi eq, %arg1, %c0_i32 : i32
    %1 = arith.extui %0 : i1 to i32
    %c0_i32_0 = arith.constant 0 : i32
    %2 = arith.cmpi ne, %1, %c0_i32_0 : i32
    scf.if %2 {
      %c0_25 = arith.constant 0 : index
      %c0_26 = arith.constant 0 : index
      %c0_27 = arith.constant 0 : index
      %66 = vector.load %arg5[%c0_25, %c0_26, %c0_27] : memref<1x8x128xf32, #tpu.memory_space<vmem>>, vector<1x8x128xf32>
      %67 = vector.shape_cast %66 : vector<1x8x128xf32> to vector<8x128xf32>
      %c0_28 = arith.constant 0 : index
      %68 = memref.load %arg2[%c0_28] : memref<1xi32, #tpu.memory_space<smem>>
      %69 = tpu.iota {dimensions = array<i32: 1>} : vector<1x128xi32>
      %70 = vector.broadcast %68 : i32 to vector<1x128xi32>
      %71 = arith.cmpi slt, %69, %70 : vector<1x128xi32>
      %72 = vector.extract_strided_slice %67 {offsets = [0, 0], sizes = [4, 128], strides = [1, 1]} : vector<8x128xf32> to vector<4x128xf32>
      %73 = vector.extract_strided_slice %67 {offsets = [4, 0], sizes = [4, 128], strides = [1, 1]} : vector<8x128xf32> to vector<4x128xf32>
      %74 = arith.subf %72, %73 : vector<4x128xf32>
      %75 = math.absf %74 : vector<4x128xf32>
      %cst_29 = arith.constant 0.000000e+00 : f32
      %76 = vector.shape_cast %71 : vector<1x128xi1> to vector<1x128xi1>
      %77 = vector.broadcast %76 : vector<1x128xi1> to vector<4x128xi1>
      %78 = vector.broadcast %cst_29 : f32 to vector<4x128xf32>
      %79 = arith.select %77, %75, %78 : vector<4x128xi1>, vector<4x128xf32>
      %80 = vector.shape_cast %79 : vector<4x128xf32> to vector<1x4x128xf32>
      %cst_30 = arith.constant dense<0.000000e+00> : vector<1xf32>
      %81 = vector.multi_reduction <add>, %80, %cst_30 [1, 2] : vector<1x4x128xf32> to vector<1xf32>
      %82 = vector.shape_cast %81 : vector<1xf32> to vector<1x1x1xf32>
      %83 = vector.extract %82[0, 0, 0] : f32 from vector<1x1x1xf32>
      %84 = vector.extract_strided_slice %67 {offsets = [0, 0], sizes = [1, 128], strides = [1, 1]} : vector<8x128xf32> to vector<1x128xf32>
      %85 = vector.extract_strided_slice %67 {offsets = [1, 0], sizes = [1, 128], strides = [1, 1]} : vector<8x128xf32> to vector<1x128xf32>
      %86 = vector.extract_strided_slice %67 {offsets = [2, 0], sizes = [1, 128], strides = [1, 1]} : vector<8x128xf32> to vector<1x128xf32>
      %87 = vector.extract_strided_slice %67 {offsets = [3, 0], sizes = [1, 128], strides = [1, 1]} : vector<8x128xf32> to vector<1x128xf32>
      %88 = vector.extract_strided_slice %67 {offsets = [4, 0], sizes = [1, 128], strides = [1, 1]} : vector<8x128xf32> to vector<1x128xf32>
      %89 = vector.extract_strided_slice %67 {offsets = [5, 0], sizes = [1, 128], strides = [1, 1]} : vector<8x128xf32> to vector<1x128xf32>
      %90 = vector.extract_strided_slice %67 {offsets = [6, 0], sizes = [1, 128], strides = [1, 1]} : vector<8x128xf32> to vector<1x128xf32>
      %91 = vector.extract_strided_slice %67 {offsets = [7, 0], sizes = [1, 128], strides = [1, 1]} : vector<8x128xf32> to vector<1x128xf32>
      %cst_31 = arith.constant 5.000000e-01 : f32
      %92 = vector.broadcast %cst_31 : f32 to vector<1x128xf32>
      %93 = arith.mulf %92, %86 : vector<1x128xf32>
      %94 = arith.subf %84, %93 : vector<1x128xf32>
      %cst_32 = arith.constant 5.000000e-01 : f32
      %95 = vector.broadcast %cst_32 : f32 to vector<1x128xf32>
      %96 = arith.mulf %95, %87 : vector<1x128xf32>
      %97 = arith.subf %85, %96 : vector<1x128xf32>
      %cst_33 = arith.constant 5.000000e-01 : f32
      %98 = vector.broadcast %cst_33 : f32 to vector<1x128xf32>
      %99 = arith.mulf %98, %86 : vector<1x128xf32>
      %100 = arith.addf %84, %99 : vector<1x128xf32>
      %cst_34 = arith.constant 5.000000e-01 : f32
      %101 = vector.broadcast %cst_34 : f32 to vector<1x128xf32>
      %102 = arith.mulf %101, %87 : vector<1x128xf32>
      %103 = arith.addf %85, %102 : vector<1x128xf32>
      %cst_35 = arith.constant 5.000000e-01 : f32
      %104 = vector.broadcast %cst_35 : f32 to vector<1x128xf32>
      %105 = arith.mulf %104, %90 : vector<1x128xf32>
      %106 = arith.subf %88, %105 : vector<1x128xf32>
      %cst_36 = arith.constant 5.000000e-01 : f32
      %107 = vector.broadcast %cst_36 : f32 to vector<1x128xf32>
      %108 = arith.mulf %107, %91 : vector<1x128xf32>
      %109 = arith.subf %89, %108 : vector<1x128xf32>
      %cst_37 = arith.constant 5.000000e-01 : f32
      %110 = vector.broadcast %cst_37 : f32 to vector<1x128xf32>
      %111 = arith.mulf %110, %90 : vector<1x128xf32>
      %112 = arith.addf %88, %111 : vector<1x128xf32>
      %cst_38 = arith.constant 5.000000e-01 : f32
      %113 = vector.broadcast %cst_38 : f32 to vector<1x128xf32>
      %114 = arith.mulf %113, %91 : vector<1x128xf32>
      %115 = arith.addf %89, %114 : vector<1x128xf32>
      %116 = arith.subf %100, %94 : vector<1x128xf32>
      %117 = arith.subf %103, %97 : vector<1x128xf32>
      %118 = arith.mulf %116, %117 : vector<1x128xf32>
      %119 = arith.subf %112, %106 : vector<1x128xf32>
      %120 = arith.subf %115, %109 : vector<1x128xf32>
      %121 = arith.mulf %119, %120 : vector<1x128xf32>
      %122 = arith.minimumf %100, %112 : vector<1x128xf32>
      %123 = arith.maximumf %94, %106 : vector<1x128xf32>
      %124 = arith.subf %122, %123 : vector<1x128xf32>
      %cst_39 = arith.constant 0.000000e+00 : f32
      %125 = vector.broadcast %cst_39 : f32 to vector<1x128xf32>
      %126 = arith.maximumf %124, %125 : vector<1x128xf32>
      %127 = arith.minimumf %103, %115 : vector<1x128xf32>
      %128 = arith.maximumf %97, %109 : vector<1x128xf32>
      %129 = arith.subf %127, %128 : vector<1x128xf32>
      %cst_40 = arith.constant 0.000000e+00 : f32
      %130 = vector.broadcast %cst_40 : f32 to vector<1x128xf32>
      %131 = arith.maximumf %129, %130 : vector<1x128xf32>
      %132 = arith.mulf %126, %131 : vector<1x128xf32>
      %133 = arith.addf %118, %121 : vector<1x128xf32>
      %134 = arith.subf %133, %132 : vector<1x128xf32>
      %135 = arith.maximumf %100, %112 : vector<1x128xf32>
      %136 = arith.minimumf %94, %106 : vector<1x128xf32>
      %137 = arith.subf %135, %136 : vector<1x128xf32>
      %cst_41 = arith.constant 0.000000e+00 : f32
      %138 = vector.broadcast %cst_41 : f32 to vector<1x128xf32>
      %139 = arith.maximumf %137, %138 : vector<1x128xf32>
      %140 = arith.maximumf %103, %115 : vector<1x128xf32>
      %141 = arith.minimumf %97, %109 : vector<1x128xf32>
      %142 = arith.subf %140, %141 : vector<1x128xf32>
      %cst_42 = arith.constant 0.000000e+00 : f32
      %143 = vector.broadcast %cst_42 : f32 to vector<1x128xf32>
      %144 = arith.maximumf %142, %143 : vector<1x128xf32>
      %145 = arith.mulf %139, %144 : vector<1x128xf32>
      %cst_43 = arith.constant 1.000000e+00 : f32
      %146 = vector.broadcast %cst_43 : f32 to vector<1x128xf32>
      %147 = arith.select %71, %134, %146 : vector<1x128xi1>, vector<1x128xf32>
      %148 = tpu.reciprocal %147 {approx = true} : vector<1x128xf32> -> vector<1x128xf32>
      %149 = arith.mulf %147, %148 : vector<1x128xf32>
      %cst_44 = arith.constant 2.000000e+00 : f32
      %150 = vector.broadcast %cst_44 : f32 to vector<1x128xf32>
      %151 = arith.subf %150, %149 : vector<1x128xf32>
      %152 = arith.mulf %148, %151 : vector<1x128xf32>
      %cst_45 = arith.constant 1.000000e+00 : f32
      %153 = vector.broadcast %cst_45 : f32 to vector<1x128xf32>
      %154 = arith.select %71, %145, %153 : vector<1x128xi1>, vector<1x128xf32>
      %155 = tpu.reciprocal %154 {approx = true} : vector<1x128xf32> -> vector<1x128xf32>
      %156 = arith.mulf %154, %155 : vector<1x128xf32>
      %cst_46 = arith.constant 2.000000e+00 : f32
      %157 = vector.broadcast %cst_46 : f32 to vector<1x128xf32>
      %158 = arith.subf %157, %156 : vector<1x128xf32>
      %159 = arith.mulf %155, %158 : vector<1x128xf32>
      %160 = arith.mulf %132, %152 : vector<1x128xf32>
      %161 = arith.subf %145, %134 : vector<1x128xf32>
      %162 = arith.mulf %161, %159 : vector<1x128xf32>
      %163 = arith.subf %160, %162 : vector<1x128xf32>
      %cst_47 = arith.constant 1.000000e+00 : f32
      %164 = vector.broadcast %cst_47 : f32 to vector<1x128xf32>
      %165 = arith.subf %164, %163 : vector<1x128xf32>
      %cst_48 = arith.constant 0.000000e+00 : f32
      %166 = vector.broadcast %cst_48 : f32 to vector<1x128xf32>
      %167 = arith.select %71, %165, %166 : vector<1x128xi1>, vector<1x128xf32>
      %168 = vector.shape_cast %167 : vector<1x128xf32> to vector<1x1x128xf32>
      %cst_49 = arith.constant dense<0.000000e+00> : vector<1xf32>
      %169 = vector.multi_reduction <add>, %168, %cst_49 [1, 2] : vector<1x1x128xf32> to vector<1xf32>
      %170 = vector.shape_cast %169 : vector<1xf32> to vector<1x1x1xf32>
      %171 = vector.extract %170[0, 0, 0] : f32 from vector<1x1x1xf32>
      %172 = tpu.iota {dimensions = array<i32: 0>} : vector<8x128xi32>
      %c2_i32 = arith.constant 2 : i32
      %173 = vector.broadcast %c2_i32 : i32 to vector<8x128xi32>
      %174 = arith.cmpi eq, %172, %173 : vector<8x128xi32>
      %c3_i32 = arith.constant 3 : i32
      %175 = vector.broadcast %c3_i32 : i32 to vector<8x128xi32>
      %176 = arith.cmpi eq, %172, %175 : vector<8x128xi32>
      %cst_50 = arith.constant 0.000000e+00 : f32
      %177 = vector.broadcast %171 : f32 to vector<8x128xf32>
      %178 = vector.broadcast %cst_50 : f32 to vector<8x128xf32>
      %179 = arith.select %176, %177, %178 : vector<8x128xi1>, vector<8x128xf32>
      %180 = vector.broadcast %83 : f32 to vector<8x128xf32>
      %181 = arith.select %174, %180, %179 : vector<8x128xi1>, vector<8x128xf32>
      %c0_51 = arith.constant 0 : index
      %c0_52 = arith.constant 0 : index
      %c0_53 = arith.constant 0 : index
      %182 = vector.load %arg6[%c0_51, %c0_52, %c0_53] : memref<1x8x128xf32, #tpu.memory_space<vmem>>, vector<1x8x128xf32>
      %183 = vector.shape_cast %182 : vector<1x8x128xf32> to vector<8x128xf32>
      %184 = vector.shape_cast %181 : vector<8x128xf32> to vector<1x8x128xf32>
      tpu.vector_store %arg6[%c0_51, %c0_52, %c0_53], %184 {strides = array<i32>} : memref<1x8x128xf32, #tpu.memory_space<vmem>>, vector<1x8x128xf32>,
    } else {
    }
    %c0 = arith.constant 0 : index
    %c0_1 = arith.constant 0 : index
    %c0_2 = arith.constant 0 : index
    %3 = vector.load %arg3[%c0, %c0_1, %c0_2] : memref<1x16x8xf32, #tpu.memory_space<vmem>>, vector<1x16x8xf32>
    %4 = vector.shape_cast %3 : vector<1x16x8xf32> to vector<16x8xf32>
    %c0_3 = arith.constant 0 : index
    %c0_4 = arith.constant 0 : index
    %c0_5 = arith.constant 0 : index
    %5 = vector.load %arg4[%c0_3, %c0_4, %c0_5] : memref<1x16x1xi32, #tpu.memory_space<vmem>>, vector<1x16x1xi32>
    %6 = vector.shape_cast %5 : vector<1x16x1xi32> to vector<16x1xi32>
    %c16_i32 = arith.constant 16 : i32
    %7 = arith.muli %arg1, %c16_i32 : i32
    %8 = tpu.iota {dimensions = array<i32: 0>} : vector<16x1xi32>
    %9 = vector.broadcast %7 : i32 to vector<16x1xi32>
    %10 = arith.addi %9, %8 : vector<16x1xi32>
    %c16_i32_6 = arith.constant 16 : i32
    %11 = vector.broadcast %c16_i32_6 : i32 to vector<16x1xi32>
    %12 = arith.cmpi slt, %10, %11 : vector<16x1xi32>
    %cst = arith.constant 0.000000e+00 : f32
    %13 = vector.shape_cast %12 : vector<16x1xi1> to vector<16x1xi1>
    %14 = vector.broadcast %13 : vector<16x1xi1> to vector<16x8xi1>
    %15 = vector.broadcast %cst : f32 to vector<16x8xf32>
    %16 = arith.select %14, %4, %15 : vector<16x8xi1>, vector<16x8xf32>
    %17 = tpu.iota {dimensions = array<i32: 1>} : vector<16x8xi32>
    %18 = vector.broadcast %6 : vector<16x1xi32> to vector<16x8xi32>
    %19 = arith.cmpi eq, %17, %18 : vector<16x8xi32>
    %cst_7 = arith.constant dense<0xFF800000> : vector<16xf32>
    %20 = vector.multi_reduction <maximumf>, %16, %cst_7 [1] : vector<16x8xf32> to vector<16xf32>
    %21 = vector.shape_cast %20 : vector<16xf32> to vector<16x1xf32>
    %22 = vector.broadcast %21 : vector<16x1xf32> to vector<16x8xf32>
    %23 = arith.subf %16, %22 : vector<16x8xf32>
    %24 = math.exp %23 : vector<16x8xf32>
    %cst_8 = arith.constant dense<0.000000e+00> : vector<16xf32>
    %25 = vector.multi_reduction <add>, %24, %cst_8 [1] : vector<16x8xf32> to vector<16xf32>
    %26 = vector.shape_cast %25 : vector<16xf32> to vector<16x1xf32>
    %27 = math.log %26 : vector<16x1xf32>
    %28 = arith.addf %27, %21 : vector<16x1xf32>
    %cst_9 = arith.constant 0.000000e+00 : f32
    %29 = vector.broadcast %cst_9 : f32 to vector<16x8xf32>
    %30 = arith.select %19, %16, %29 : vector<16x8xi1>, vector<16x8xf32>
    %cst_10 = arith.constant dense<0.000000e+00> : vector<16xf32>
    %31 = vector.multi_reduction <add>, %30, %cst_10 [1] : vector<16x8xf32> to vector<16xf32>
    %32 = vector.shape_cast %31 : vector<16xf32> to vector<16x1xf32>
    %33 = arith.subf %28, %32 : vector<16x1xf32>
    %c0_i32_11 = arith.constant 0 : i32
    %34 = vector.broadcast %c0_i32_11 : i32 to vector<16x1xi32>
    %35 = arith.cmpi eq, %6, %34 : vector<16x1xi32>
    %cst_12 = arith.constant 1.000000e-01 : f32
    %cst_13 = arith.constant 1.000000e+00 : f32
    %36 = vector.broadcast %cst_12 : f32 to vector<16x1xf32>
    %37 = vector.broadcast %cst_13 : f32 to vector<16x1xf32>
    %38 = arith.select %35, %36, %37 : vector<16x1xi1>, vector<16x1xf32>
    %cst_14 = arith.constant 0.000000e+00 : f32
    %39 = vector.broadcast %cst_14 : f32 to vector<16x1xf32>
    %40 = arith.select %12, %38, %39 : vector<16x1xi1>, vector<16x1xf32>
    %41 = arith.mulf %40, %33 : vector<16x1xf32>
    %42 = vector.shape_cast %41 : vector<16x1xf32> to vector<1x16x1xf32>
    %cst_15 = arith.constant dense<0.000000e+00> : vector<1xf32>
    %43 = vector.multi_reduction <add>, %42, %cst_15 [1, 2] : vector<1x16x1xf32> to vector<1xf32>
    %44 = vector.shape_cast %43 : vector<1xf32> to vector<1x1x1xf32>
    %45 = vector.extract %44[0, 0, 0] : f32 from vector<1x1x1xf32>
    %46 = vector.shape_cast %40 : vector<16x1xf32> to vector<1x16x1xf32>
    %cst_16 = arith.constant dense<0.000000e+00> : vector<1xf32>
    %47 = vector.multi_reduction <add>, %46, %cst_16 [1, 2] : vector<1x16x1xf32> to vector<1xf32>
    %48 = vector.shape_cast %47 : vector<1xf32> to vector<1x1x1xf32>
    %49 = vector.extract %48[0, 0, 0] : f32 from vector<1x1x1xf32>
    %50 = tpu.iota {dimensions = array<i32: 0>} : vector<8x128xi32>
    %c0_17 = arith.constant 0 : index
    %c0_18 = arith.constant 0 : index
    %c0_19 = arith.constant 0 : index
    %51 = vector.load %arg6[%c0_17, %c0_18, %c0_19] : memref<1x8x128xf32, #tpu.memory_space<vmem>>, vector<1x8x128xf32>
    %52 = vector.shape_cast %51 : vector<1x8x128xf32> to vector<8x128xf32>
    %c0_i32_20 = arith.constant 0 : i32
    %53 = vector.broadcast %c0_i32_20 : i32 to vector<8x128xi32>
    %54 = arith.cmpi eq, %50, %53 : vector<8x128xi32>
    %c1_i32 = arith.constant 1 : i32
    %55 = vector.broadcast %c1_i32 : i32 to vector<8x128xi32>
    %56 = arith.cmpi eq, %50, %55 : vector<8x128xi32>
    %cst_21 = arith.constant 0.000000e+00 : f32
    %57 = vector.broadcast %49 : f32 to vector<8x128xf32>
    %58 = vector.broadcast %cst_21 : f32 to vector<8x128xf32>
    %59 = arith.select %56, %57, %58 : vector<8x128xi1>, vector<8x128xf32>
    %60 = vector.broadcast %45 : f32 to vector<8x128xf32>
    %61 = arith.select %54, %60, %59 : vector<8x128xi1>, vector<8x128xf32>
    %62 = arith.addf %52, %61 : vector<8x128xf32>
    %c0_22 = arith.constant 0 : index
    %c0_23 = arith.constant 0 : index
    %c0_24 = arith.constant 0 : index
    %63 = vector.load %arg6[%c0_22, %c0_23, %c0_24] : memref<1x8x128xf32, #tpu.memory_space<vmem>>, vector<1x8x128xf32>
    %64 = vector.shape_cast %63 : vector<1x8x128xf32> to vector<8x128xf32>
    %65 = vector.shape_cast %62 : vector<8x128xf32> to vector<1x8x128xf32>
    tpu.vector_store %arg6[%c0_22, %c0_23, %c0_24], %65 {strides = array<i32>} : memref<1x8x128xf32, #tpu.memory_space<vmem>>, vector<1x8x128xf32>,
    return
  }
  func.func @transform_0(%arg0: i32, %arg1: i32, %arg2: memref<1xi32, #tpu.memory_space<smem>>) -> (i32, i32, i32) {
    %c0_i32 = arith.constant 0 : i32
    %c0_i32_0 = arith.constant 0 : i32
    return %arg0, %arg1, %c0_i32 : i32, i32, i32
  }
  func.func @transform_1(%arg0: i32, %arg1: i32, %arg2: memref<1xi32, #tpu.memory_space<smem>>) -> (i32, i32, i32) {
    %c0_i32 = arith.constant 0 : i32
    %c0_i32_0 = arith.constant 0 : i32
    return %arg0, %arg1, %c0_i32 : i32, i32, i32
  }
  func.func @transform_2(%arg0: i32, %arg1: i32, %arg2: memref<1xi32, #tpu.memory_space<smem>>) -> (i32, i32, i32) {
    %c0_i32 = arith.constant 0 : i32
    %c0_i32_0 = arith.constant 0 : i32
    %c0_i32_1 = arith.constant 0 : i32
    return %arg0, %c0_i32, %c0_i32_0 : i32, i32, i32
  }
  func.func @transform_3(%arg0: i32, %arg1: i32, %arg2: memref<1xi32, #tpu.memory_space<smem>>) -> (i32, i32, i32) {
    %c0_i32 = arith.constant 0 : i32
    %c0_i32_0 = arith.constant 0 : i32
    %c0_i32_1 = arith.constant 0 : i32
    return %arg0, %c0_i32, %c0_i32_0 : i32, i32, i32
  }
}

</mosaic_0001>

<llo_original>
// kernel: tpu_custom_call.1
$region0: #{tpu_custom_call.1}
  #allocation0 [shape = 'u32[]', space=smem, size = 0x4, offset = 0x4, fixed_abs, tag = 'smem constant byte address 0x4 - core index']
  #allocation1 [shape = 'u32[72,128]{1,0:T(1,128)}', space=vmem, size = 0x9000, scoped, tag = 'internal scratch']
  #allocation2 [shape = 's32[1]{0}', space=sflag, size = 0x4, scoped, tag = 'scoped memory for tpu_custom_call.1']
  #allocation3 [shape = 's32[1]{0:T(128)S(6)}', space=smem, size = 0x200, scoped, tag = 'prefetched SMEM operand 0']
  %s0 = inlined_call_operand.<no memory space> [shape: s32[1], index: 0, kind: input, shape index: {}]
  %s1 = inlined_call_operand.vmem [shape: f32[3,16,8], index: 1, kind: input, shape index: {}]
  %s2 = inlined_call_operand.vmem [shape: s32[3,16,1], index: 2, kind: input, shape index: {}]
  %s3 = inlined_call_operand.vmem [shape: f32[3,8,128], index: 3, kind: input, shape index: {}]
  %s4 = inlined_call_operand.hbm [shape: f32[3,8,128], index: 4, kind: output, shape index: {}]
  %s5 = sld [smem:[#allocation0]]
  $region49: #{tpu_custom_call.1} parent=0
    _
  %s7 = ssub.s32 1, %s5
  %s8 = scalar_select 0, %s7, %s5
  %9 = sst [smem:[#allocation3]] %s0
  $region1: #{tpu_custom_call.1} parent=0
    #allocation4 [shape = 'u8[8192]{0}', space=vmem, size = 0x2000, scoped, tag = 'output window, operand 0']
    #allocation5 [shape = 's32[2]{0}', space=sflag, size = 0x8, scoped, tag = 'scoped memory for tpu_custom_call.1']
    %10 = vsyncpa [#allocation5], 0
    %s11 = scalar_lea.sflag [#allocation5], 1
    %12 = vsyncpa %s11, 0
    loop: start=0, step=1, limit=5
    $region2: #{tpu_custom_call.1} parent=1 // loop_pre_header
      _
    $region3: #{tpu_custom_call.1} parent=1 // loop_header
      %s14 = sphi 0, %s18
      %p15 = scmp.ge.s32.totalorder %s14, 5
      %s21 = sphi 0, %s33
      %s22 = sphi 0, %s29
      %s23 = sphi 0, %s21
      %s24 = sphi 0, %s22
      %s25 = sphi 0, %s23
      %s26 = sphi 0, %s24
      %s38 = sphi 0, %s40
      %s41 = sphi 0, %s38
      %s42 = sphi 0, %s41
      %s58 = sphi 0, %s42
      %s66 = sphi 0, %s68
      %s69 = sphi 0, %s66
      %s70 = sphi 0, %s69
      %s86 = sphi 0, %s70
      %s92 = sphi 0, %s94
      %s95 = sphi 0, %s92
      %s96 = sphi 0, %s95
      %s112 = sphi 0, %s96
      %s118 = sphi 0, %s120
      %s121 = sphi 0, %s118
      %s122 = sphi 0, %s121
      %s138 = sphi 0, %s122
    $region4: #{tpu_custom_call.1} parent=1 // loop_header_branch
      %17 = sbr.rel (%p15) target = $region8
    $region5: #{tpu_custom_call.1} parent=1 // loop_body
      %s19 = ssub.s32 %s14, 1
      %s20 = ssub.s32 %s14, 2
      %s27 = sadd.s32 1, %s22
      %p28 = scmp.ge.s32.totalorder %s27, 1
      %s29 = scalar_select %p28, 0, %s27
      %s30 = sadd.s32 1, %s21
      %s31 = scalar_select %p28, %s30, %s21
      %p32 = scmp.ge.s32.totalorder %s31, 3
      %s33 = scalar_select %p32, 0, %s31
      %s34 = ssub.s32 %s21, %s33
      %s35 = ssub.s32 %s22, %s29
      %s36 = sor.u32 %s34, %s35
      %p37 = scmp.eq.s32.totalorder %s36, 0
      %s39 = sadd.s32 %s38, 1
      %s40 = scalar_select %p37, %s38, %s39
      %p43 = pneg %p37
      %p44 = scmp.eq.s32.totalorder %s14, 2
      %p45 = por %p43, %p44
      %p46 = scmp.ne.s32.totalorder %s38, %s41
      %p47 = scmp.eq.s32.totalorder %s14, 0
      %p48 = por %p46, %p47
      %p49 = scmp.ne.s32.totalorder %s38, %s41
      %p50 = scmp.eq.s32.totalorder %s19, 2
      %p51 = por %p49, %p50
      %p52 = scmp.ne.s32.totalorder %s41, %s42
      %p53 = scmp.eq.s32.totalorder %s19, 0
      %p54 = por %p52, %p53
      %p55 = scmp.ne.s32.totalorder %s41, %s42
      %p56 = scmp.eq.s32.totalorder %s20, 2
      %p57 = por %p55, %p56
      %p59 = scmp.ne.s32.totalorder %s42, %s58
      %p60 = scmp.eq.s32.totalorder %s20, 0
      %p61 = por %p59, %p60
      %s62 = ssub.s32 %s21, %s33
      %s63 = ssub.s32 %s22, %s29
      %s64 = sor.u32 %s62, %s63
      %p65 = scmp.eq.s32.totalorder %s64, 0
      %s67 = sadd.s32 %s66, 1
      %s68 = scalar_select %p65, %s66, %s67
      %p71 = pneg %p65
      %p72 = scmp.eq.s32.totalorder %s14, 2
      %p73 = por %p71, %p72
      %p74 = scmp.ne.s32.totalorder %s66, %s69
      %p75 = scmp.eq.s32.totalorder %s14, 0
      %p76 = por %p74, %p75
      %p77 = scmp.ne.s32.totalorder %s66, %s69
      %p78 = scmp.eq.s32.totalorder %s19, 2
      %p79 = por %p77, %p78
      %p80 = scmp.ne.s32.totalorder %s69, %s70
      %p81 = scmp.eq.s32.totalorder %s19, 0
      %p82 = por %p80, %p81
      %p83 = scmp.ne.s32.totalorder %s69, %s70
      %p84 = scmp.eq.s32.totalorder %s20, 2
      %p85 = por %p83, %p84
      %p87 = scmp.ne.s32.totalorder %s70, %s86
      %p88 = scmp.eq.s32.totalorder %s20, 0
      %p89 = por %p87, %p88
      %s90 = ssub.s32 %s21, %s33
      %p91 = scmp.eq.s32.totalorder %s90, 0
      %s93 = sadd.s32 %s92, 1
      %s94 = scalar_select %p91, %s92, %s93
      %p97 = pneg %p91
      %p98 = scmp.eq.s32.totalorder %s14, 2
      %p99 = por %p97, %p98
      %p100 = scmp.ne.s32.totalorder %s92, %s95
      %p101 = scmp.eq.s32.totalorder %s14, 0
      %p102 = por %p100, %p101
      %p103 = scmp.ne.s32.totalorder %s92, %s95
      %p104 = scmp.eq.s32.totalorder %s19, 2
      %p105 = por %p103, %p104
      %p106 = scmp.ne.s32.totalorder %s95, %s96
      %p107 = scmp.eq.s32.totalorder %s19, 0
      %p108 = por %p106, %p107
      %p109 = scmp.ne.s32.totalorder %s95, %s96
      %p110 = scmp.eq.s32.totalorder %s20, 2
      %p111 = por %p109, %p110
      %p113 = scmp.ne.s32.totalorder %s96, %s112
      %p114 = scmp.eq.s32.totalorder %s20, 0
      %p115 = por %p113, %p114
      %s116 = ssub.s32 %s21, %s33
      %p117 = scmp.eq.s32.totalorder %s116, 0
      %s119 = sadd.s32 %s118, 1
      %s120 = scalar_select %p117, %s118, %s119
      %p123 = pneg %p117
      %p124 = scmp.eq.s32.totalorder %s14, 2
      %p125 = por %p123, %p124
      %p126 = scmp.ne.s32.totalorder %s118, %s121
      %p127 = scmp.eq.s32.totalorder %s14, 0
      %p128 = por %p126, %p127
      %p129 = scmp.ne.s32.totalorder %s118, %s121
      %p130 = scmp.eq.s32.totalorder %s19, 2
      %p131 = por %p129, %p130
      %p132 = scmp.ne.s32.totalorder %s121, %s122
      %p133 = scmp.eq.s32.totalorder %s19, 0
      %p134 = por %p132, %p133
      %p135 = scmp.ne.s32.totalorder %s121, %s122
      %p136 = scmp.eq.s32.totalorder %s20, 2
      %p137 = por %p135, %p136
      %p139 = scmp.ne.s32.totalorder %s122, %s138
      %p140 = scmp.eq.s32.totalorder %s20, 0
      %p141 = por %p139, %p140
      %p142 = scmp.le.s32.totalorder 1, %s14
      %p143 = scmp.lt.s32.totalorder %s14, 4
      %p144 = pnand %p142, %p143
      %p145 = pneg %p144
      // Predicated region
      $region9: #{tpu_custom_call.1} parent=5 // pred_check
        _
      $region10: #{tpu_custom_call.1} parent=5 // pred_check_branch
        %147 = sbr.rel (%p144) target = $region12
      $region11: #{tpu_custom_call.1} parent=5 // pred_region
        %s148 = ssub.s32 %s14, 1
      $region12: #{tpu_custom_call.1} parent=5 // pred_fallthru
        _
      %p149 = scmp.lt.s32.totalorder %s14, 3
      // Predicated region
      $region13: #{tpu_custom_call.1} parent=5 // pred_check
        %p150 = pneg %p149
      $region14: #{tpu_custom_call.1} parent=5 // pred_check_branch
        %152 = sbr.rel (%p150) target = $region16
      $region15: #{tpu_custom_call.1} parent=5 // pred_region
        // Predicated region
        $region17: #{tpu_custom_call.1} parent=15 // pred_check
          %p153 = pneg %p48
        $region18: #{tpu_custom_call.1} parent=15 // pred_check_branch
          %155 = sbr.rel (%p153) target = $region20
        $region19: #{tpu_custom_call.1} parent=15 // pred_region
          %s156 = smul.u32 2, %s22
          %p157 = scmp.lt.s32.totalorder %s21, 2
          %s158 = scalar_select %p157, %s21, 2
          %p159 = scmp.lt.s32.totalorder %s156, 1
          %s160 = scalar_select %p159, %s156, 1
          %s161 = smul.addr %s158, 2
          %s162 = sadd.s32 %s160, %s161
          %s163 = smul.addr %s162, 8
          %s164 = scalar_lea.vmem %s1, %s163
          %s165 = smul.u32 2, %s22
        $region20: #{tpu_custom_call.1} parent=15 // pred_fallthru
          _
        // Predicated region
        $region21: #{tpu_custom_call.1} parent=15 // pred_check
          %p166 = pneg %p76
        $region22: #{tpu_custom_call.1} parent=15 // pred_check_branch
          %168 = sbr.rel (%p166) target = $region24
        $region23: #{tpu_custom_call.1} parent=15 // pred_region
          %s169 = smul.u32 2, %s22
          %p170 = scmp.lt.s32.totalorder %s21, 2
          %s171 = scalar_select %p170, %s21, 2
          %p172 = scmp.lt.s32.totalorder %s169, 1
          %s173 = scalar_select %p172, %s169, 1
          %s174 = smul.addr %s171, 2
          %s175 = sadd.s32 %s173, %s174
          %s176 = smul.addr %s175, 8
          %s177 = scalar_lea.vmem %s2, %s176
          %s178 = smul.u32 2, %s22
        $region24: #{tpu_custom_call.1} parent=15 // pred_fallthru
          _
        // Predicated region
        $region25: #{tpu_custom_call.1} parent=15 // pred_check
          %p179 = pneg %p102
        $region26: #{tpu_custom_call.1} parent=15 // pred_check_branch
          %181 = sbr.rel (%p179) target = $region28
        $region27: #{tpu_custom_call.1} parent=15 // pred_region
          %p182 = scmp.lt.s32.totalorder %s21, 2
          %s183 = scalar_select %p182, %s21, 2
          %s184 = smul.addr %s183, 8
          %s185 = scalar_lea.vmem %s3, %s184
        $region28: #{tpu_custom_call.1} parent=15 // pred_fallthru
          _
      $region16: #{tpu_custom_call.1} parent=5 // pred_fallthru
        _
      %p186 = scmp.le.s32.totalorder 1, %s14
      %p187 = scmp.lt.s32.totalorder %s14, 4
      %p188 = pnand %p186, %p187
      %p189 = pneg %p188
      // Predicated region
      $region29: #{tpu_custom_call.1} parent=5 // pred_check
        _
      $region30: #{tpu_custom_call.1} parent=5 // pred_check_branch
        %191 = sbr.rel (%p188) target = $region32
      $region31: #{tpu_custom_call.1} parent=5 // pred_region
        %s192 = ssub.s32 %s14, 1
        %s193 = smul.u32 2, %s24
        %p194 = scmp.lt.s32.totalorder %s23, 2
        %s195 = scalar_select %p194, %s23, 2
        %p196 = scmp.lt.s32.totalorder %s193, 1
        %s197 = scalar_select %p196, %s193, 1
        %s198 = smul.addr %s195, 2
        %s199 = sadd.s32 %s197, %s198
        %s200 = smul.addr %s199, 8
        %s201 = scalar_lea.vmem %s1, %s200
        %p202 = pneg %p54
        %p203 = pneg %p51
        %s204 = smul.u32 2, %s24
        %p205 = scmp.lt.s32.totalorder %s23, 2
        %s206 = scalar_select %p205, %s23, 2
        %p207 = scmp.lt.s32.totalorder %s204, 1
        %s208 = scalar_select %p207, %s204, 1
        %s209 = smul.addr %s206, 2
        %s210 = sadd.s32 %s208, %s209
        %s211 = smul.addr %s210, 8
        %s212 = scalar_lea.vmem %s2, %s211
        %p213 = pneg %p82
        %p214 = pneg %p79
        %p215 = scmp.lt.s32.totalorder %s23, 2
        %s216 = scalar_select %p215, %s23, 2
        %s217 = smul.addr %s216, 8
        %s218 = scalar_lea.vmem %s3, %s217
        %p219 = pneg %p108
        %p220 = pneg %p105
        %p221 = pneg %p134
        %p222 = pneg %p131
        %s223 = sand.u32 %s121, 1
        %s224 = scalar_lea.sflag [#allocation5], %s223
        %s225 = sand.u32 %s121, 1
        %s226 = smul.addr %s225, 8
        %s227 = scalar_lea.vmem [#allocation4], %s226
        %s228 = smul.u32 2, %s24
        %p229 = scmp.lt.s32.totalorder %s23, 2
        %s230 = scalar_select %p229, %s23, 2
        %p231 = scmp.lt.s32.totalorder %s228, 1
        %s232 = scalar_select %p231, %s228, 1
        %s233 = smul.addr %s230, 2
        %s234 = sadd.s32 %s232, %s233
        %s235 = smul.addr %s234, 8
        %s236 = scalar_lea.vmem %s1, %s235
        %s237 = smul.u32 2, %s24
        %s238 = smul.u32 2, %s24
        %p239 = scmp.lt.s32.totalorder %s23, 2
        %s240 = scalar_select %p239, %s23, 2
        %p241 = scmp.lt.s32.totalorder %s238, 1
        %s242 = scalar_select %p241, %s238, 1
        %s243 = smul.addr %s240, 2
        %s244 = sadd.s32 %s242, %s243
        %s245 = smul.addr %s244, 8
        %s246 = scalar_lea.vmem %s2, %s245
        %s247 = smul.u32 2, %s24
        %p248 = scmp.lt.s32.totalorder %s23, 2
        %s249 = scalar_select %p248, %s23, 2
        %s250 = smul.addr %s249, 8
        %s251 = scalar_lea.vmem %s3, %s250
        %p252 = scmp.eq.s32.totalorder %s24, 0
        // Predicated region
        $region33: #{tpu_custom_call.1} parent=31 // pred_check
          %p253 = pneg %p252
        $region34: #{tpu_custom_call.1} parent=31 // pred_check_branch
          %255 = sbr.rel (%p253) target = $region36
        $region35: #{tpu_custom_call.1} parent=31 // pred_region
          %v256 = vld [vmem:[%s251] sm:$0xff]
          %s257 = sld [smem:[#allocation3]]
          %v258 = vlaneseq
          %v259 = vand.u32 %v258, 127
          %v260 = vstv %s257
          %vm261 = vcmp.lt.s32.totalorder %v259, %v260
          %v263 = vrot.slane %v256, 4
          %v265 = vsub.f32 %v256, %v263
          %v266 = vand.u32 2147483647, %v265
          %v267 = vsel %vm261, 1, 0
          %vm268 = vcmp.eq.s32.totalorder %v267, 1
          %v269 = vsel %vm268, %v266, 0.0
          %vm270 = vcmask 1043456
          %v271 = vsel %vm270, %v269, 0.0
          %272 = vadd.xlane.f32.xlu0 %v271
          %v273 = vpop.xlane.xlu0 %272
          %v274 = vrot.slane %v273, 4
          %v275 = vadd.f32 %v273, %v274
          %v276 = vrot.slane %v275, 2
          %v277 = vadd.f32 %v275, %v276
          %v278 = vrot.slane %v277, 1
          %v279 = vadd.f32 %v277, %v278
          %s280 = vtos %v279
          %v281 = vmul.f32 %v256, 0.5
          %v283 = vrot.slane %v281, 2
          %v285 = vsub.f32 %v256, %v283
          %v286 = vadd.f32 %v256, %v283
          %v287 = vsub.f32 %v286, %v285
          %v289 = vrot.slane %v287, 1
          %v291 = vmul.f32 %v287, %v289
          %v293 = vrot.slane %v286, 4
          %v295 = vmin.f32 %v286, %v293
          %v297 = vrot.slane %v285, 4
          %v299 = vmax.f32 %v285, %v297
          %v300 = vsub.f32 %v295, %v299
          %v301 = vmax.f32 %v300, 0.0
          %v303 = vrot.slane %v301, 1
          %v305 = vmul.f32 %v301, %v303
          %v307 = vrot.slane %v291, 4
          %v309 = vadd.f32 %v291, %v307
          %v310 = vsub.f32 %v309, %v305
          %v311 = vmax.f32 %v286, %v293
          %v312 = vmin.f32 %v285, %v297
          %v313 = vsub.f32 %v311, %v312
          %v314 = vmax.f32 %v313, 0.0
          %v316 = vrot.slane %v314, 1
          %v318 = vmul.f32 %v314, %v316
          %v319 = vsel %vm261, %v310, 1.0
          %v320 = vrcp.pop %v319
          %v321 = vmul.f32 %v319, %v320
          %v322 = vsub.f32 2.0, %v321
          %v323 = vmul.f32 %v320, %v322
          %v324 = vsel %vm261, %v318, 1.0
          %v325 = vrcp.pop %v324
          %v326 = vmul.f32 %v324, %v325
          %v327 = vsub.f32 2.0, %v326
          %v328 = vmul.f32 %v325, %v327
          %v329 = vmul.f32 %v305, %v323
          %v330 = vsub.f32 %v318, %v310
          %v331 = vmul.f32 %v330, %v328
          %v332 = vsub.f32 %v329, %v331
          %v333 = vsub.f32 1.0, %v332
          %v334 = vsel %vm261, %v333, 0.0
          %vm335 = vcmask 1040384
          %v336 = vsel %vm335, %v334, 0.0
          %337 = vadd.xlane.f32.xlu0 %v336
          %v338 = vpop.xlane.xlu0 %337
          %v339 = vrot.slane %v338, 4
          %v340 = vadd.f32 %v338, %v339
          %v341 = vrot.slane %v340, 2
          %v342 = vadd.f32 %v340, %v341
          %v343 = vrot.slane %v342, 1
          %v344 = vadd.f32 %v342, %v343
          %s345 = vtos %v344
          %v346 = vlaneseq
          %v347 = vshrl.u32 %v346, 7
          %vm348 = vcmp.eq.s32.totalorder %v347, 2
          %vm349 = vcmp.eq.s32.totalorder %v347, 3
          %v350 = vstv %s345
          %v351 = vsel %vm349, %v350, 0.0
          %v352 = vstv %s280
          %v353 = vsel %vm348, %v352, %v351
          %354 = vst [vmem:[%s227] sm:$0xff] %v353
        $region36: #{tpu_custom_call.1} parent=31 // pred_fallthru
          _
        %v355 = vld [vmem:[%s236] sm:$0xff]
        %v356 = vld [vmem:[%s236 + $0x8] sm:$0xff]
        %v357 = vld [vmem:[%s246] sm:$0xff]
        %v358 = vld [vmem:[%s246 + $0x8] sm:$0xff]
        %s359 = smul.u32 %s24, 16
        %v360 = vlaneseq
        %v361 = vshrl.u32 %v360, 7
        %v362 = vadd.s32 %v361, 8
        %v363 = vstv %s359
        %v364 = vadd.s32 %v363, %v361
        %v365 = vadd.s32 %v363, %v362
        %vm366 = vcmp.lt.s32.totalorder %v364, 16
        %vm367 = vcmp.lt.s32.totalorder %v365, 16
        %v368 = vsel %vm366, 1, 0
        %v369 = vsel %vm367, 1, 0
        %vm370 = vcmp.eq.s32.totalorder %v368, 1
        %vm371 = vcmp.eq.s32.totalorder %v369, 1
        %v372 = vsel %vm370, %v355, 0.0
        %v373 = vsel %vm371, %v356, 0.0
        %v374 = vlaneseq
        %v375 = vand.u32 %v374, 127
        %376 = vset.pattern.permute.xlu0 0
        %377 = vperm.xlu0 %376, %v357
        %v378 = vpop.permute.xlu0 %377
        %379 = vset.pattern.permute.xlu0 0
        %380 = vperm.xlu0 %379, %v358
        %v381 = vpop.permute.xlu0 %380
        %vm382 = vcmp.eq.s32.totalorder %v375, %v378
        %vm383 = vcmp.eq.s32.totalorder %v375, %v381
        %vm384 = vcmask 64512
        %v385 = vsel %vm384, %v372, -inf
        %386 = vmax.xlane.f32.xlu0 %v385
        %v387 = vpop.xlane.xlu0 %386
        %v388 = vsel %vm384, %v373, -inf
        %389 = vmax.xlane.f32.xlu0 %v388
        %v390 = vpop.xlane.xlu0 %389
        %v391 = vsub.f32 %v372, %v387
        %v392 = vsub.f32 %v373, %v390
        %v393 = vmul.f32 %v391, 1.442695
        %v394 = vpow.pop %v393
        %v395 = vmul.f32 %v392, 1.442695
        %v396 = vpow.pop %v395
        %v397 = vsel %vm384, %v394, 0.0
        %398 = vadd.xlane.f32.xlu0 %v397
        %v399 = vpop.xlane.xlu0 %398
        %v400 = vsel %vm384, %v396, 0.0
        %401 = vadd.xlane.f32.xlu0 %v400
        %v402 = vpop.xlane.xlu0 %401
        %v403 = vlog2.pop %v399
        %v404 = vmul.f32 %v403, 0.6931472
        %v405 = vlog2.pop %v402
        %v406 = vmul.f32 %v405, 0.6931472
        %v407 = vadd.f32 %v404, %v387
        %v408 = vadd.f32 %v406, %v390
        %v409 = vsel %vm382, %v372, 0.0
        %v410 = vsel %vm383, %v373, 0.0
        %v411 = vsel %vm384, %v409, 0.0
        %412 = vadd.xlane.f32.xlu0 %v411
        %v413 = vpop.xlane.xlu0 %412
        %v414 = vsel %vm384, %v410, 0.0
        %415 = vadd.xlane.f32.xlu0 %v414
        %v416 = vpop.xlane.xlu0 %415
        %v417 = vsub.f32 %v407, %v413
        %v418 = vsub.f32 %v408, %v416
        %vm419 = vcmp.eq.s32.totalorder %v357, 0
        %vm420 = vcmp.eq.s32.totalorder %v358, 0
        %v421 = vsel %vm419, 0.1, 1.0
        %v422 = vsel %vm420, 0.1, 1.0
        %v423 = vsel %vm366, %v421, 0.0
        %v424 = vsel %vm367, %v422, 0.0
        %v425 = vmul.f32 %v423, %v417
        %v426 = vmul.f32 %v424, %v418
        %vm427 = vcmask 7168
        %v428 = vsel %vm427, %v425, 0.0
        %v429 = vsel %vm427, %v426, 0.0
        %v430 = vadd.f32 %v428, %v429
        %431 = vadd.xlane.f32.xlu0 %v430
        %v432 = vpop.xlane.xlu0 %431
        %v433 = vrot.slane %v432, 4
        %v434 = vadd.f32 %v432, %v433
        %v435 = vrot.slane %v434, 2
        %v436 = vadd.f32 %v434, %v435
        %v437 = vrot.slane %v436, 1
        %v438 = vadd.f32 %v436, %v437
        %s439 = vtos %v438
        %v440 = vsel %vm427, %v423, 0.0
        %v441 = vsel %vm427, %v424, 0.0
        %v442 = vadd.f32 %v440, %v441
        %443 = vadd.xlane.f32.xlu0 %v442
        %v444 = vpop.xlane.xlu0 %443
        %v445 = vrot.slane %v444, 4
        %v446 = vadd.f32 %v444, %v445
        %v447 = vrot.slane %v446, 2
        %v448 = vadd.f32 %v446, %v447
        %v449 = vrot.slane %v448, 1
        %v450 = vadd.f32 %v448, %v449
        %s451 = vtos %v450
        %v452 = vld [vmem:[%s227] sm:$0xff]
        %vm453 = vcmp.eq.s32.totalorder %v361, 0
        %vm454 = vcmp.eq.s32.totalorder %v361, 1
        %v455 = vstv %s451
        %v456 = vsel %vm454, %v455, 0.0
        %v457 = vstv %s439
        %v458 = vsel %vm453, %v457, %v456
        %v459 = vadd.f32 %v452, %v458
        %460 = vst [vmem:[%s227] sm:$0xff] %v459
        %s461 = sand.u32 %s121, 1
        %s462 = scalar_lea.sflag [#allocation5], %s461
        %s463 = sand.u32 %s121, 1
        %s464 = smul.addr %s463, 8
        %s465 = scalar_lea.vmem [#allocation4], %s464
        // Predicated region
        $region37: #{tpu_custom_call.1} parent=31 // pred_check
          %p466 = pneg %p131
        $region38: #{tpu_custom_call.1} parent=31 // pred_check_branch
          %468 = sbr.rel (%p466) target = $region40
        $region39: #{tpu_custom_call.1} parent=31 // pred_region
          %470 = vsyncadd %s462, 0
          %s471 = smul.addr %s23, 8
          %s472 = scalar_lea.hbm %s4, %s471
          %s474 = sshll.u32 %s465, 4
          %s475 = int_to_ptr.vmem [resolvable:$true] %s474
          %s476 = sshll.u32 %s472, 4
          %s477 = int_to_ptr.hbm [resolvable:$true] %s476
          %479 = dma.vmem_to_hbm [thread:$0]  %s475, 128, %s477, %s462
        $region40: #{tpu_custom_call.1} parent=31 // pred_fallthru
          _
      $region32: #{tpu_custom_call.1} parent=5 // pred_fallthru
        _
      %p480 = scmp.le.s32.totalorder 2, %s14
      // Predicated region
      $region41: #{tpu_custom_call.1} parent=5 // pred_check
        %p481 = pneg %p480
      $region42: #{tpu_custom_call.1} parent=5 // pred_check_branch
        %483 = sbr.rel (%p481) target = $region44
      $region43: #{tpu_custom_call.1} parent=5 // pred_region
        %s484 = ssub.s32 %s14, 2
        // Predicated region
        $region45: #{tpu_custom_call.1} parent=43 // pred_check
          %p485 = pneg %p137
        $region46: #{tpu_custom_call.1} parent=43 // pred_check_branch
          %487 = sbr.rel (%p485) target = $region48
        $region47: #{tpu_custom_call.1} parent=43 // pred_region
          %s488 = sand.u32 %s122, 1
          %s489 = scalar_lea.sflag [#allocation5], %s488
          %s490 = sand.u32 %s122, 1
          %s491 = smul.addr %s490, 8
          %s492 = scalar_lea.vmem [#allocation4], %s491
          %494 = dma.done %s489, 128
        $region48: #{tpu_custom_call.1} parent=43 // pred_fallthru
          _
      $region44: #{tpu_custom_call.1} parent=5 // pred_fallthru
        _
    $region6: #{tpu_custom_call.1} parent=1 // loop_footer
      %s18 = sadd.s32 1, %s14
    $region7: #{tpu_custom_call.1} parent=1 // loop_footer_branch
      %13 = sbr.rel target = $region3
    $region8: #{tpu_custom_call.1} parent=1 // loop_exit
      _
    %495 = vsyncpa [#allocation5], 1
    %s496 = scalar_lea.sflag [#allocation5], 1
    %497 = vsyncpa %s496, 1

</llo_original>
